<compile_context>
chip_gen: v5e
topology: v5e:2x2
jax: 0.10.0
libtpu: 0.0.40
codegen_flags: <defaults>
</compile_context>

<pallas_src>
import functools

import jax
import jax.numpy as jnp
from jax import lax
from jax.experimental import pallas as pl
from jax.experimental.pallas import tpu as pltpu


def _unet_up_kernel(x_ref, w1_ref, b1_ref, w2_ref, b2_ref, o_ref, *, H):
    """One batch element per grid step. All arrays are lane-dense 2-D slabs.

    x_ref  : (1, H, W*Cin)      input rows (no spatial padding needed)
    w1_ref : (3*W*Cin, W*P)     ky-stacked banded conv1 weights
    b1_ref : (1, W*P)           conv1 bias tiled over w
    w2_ref : (3*W*P, W*4*Ch)    ky-stacked banded conv2 (x) convT weights
    b2_ref : (1, W*4*Ch)        fused conv2 + convT bias tiled over w
    o_ref  : (1, H, W*4*Ch)     output rows, lanes = (w, dy, dx, c_out)
    """

    def conv_rows(inp, w_ref, b_ref):
        # Fold the 3 vertical taps into the contraction axis: build the
        # row-shifted input (zero halo rows) lane-stacked as
        # [row h-1 | row h | row h+1] and do a single fat MXU matmul.
        zrow = jnp.zeros((1, inp.shape[-1]), jnp.float32)
        inp_dn = jnp.concatenate([zrow, inp[: H - 1]], axis=0)   # ky = 0 tap
        inp_up = jnp.concatenate([inp[1:], zrow], axis=0)        # ky = 2 tap
        stacked = jnp.concatenate([inp_dn, inp, inp_up], axis=-1)
        return jnp.dot(stacked, w_ref[...],
                       preferred_element_type=jnp.float32) + b_ref[...]

    x = x_ref[0]                                            # (H, W*Cin)
    mid = jnp.maximum(conv_rows(x, w1_ref, b1_ref), 0.0)    # (H, W*P)
    up = conv_rows(mid, w2_ref, b2_ref)                     # (H, W*4*Ch)
    o_ref[0] = up.astype(o_ref.dtype)


def unet_up_block(x_nchw, w1, b1, w2, b2, wt, bt):
    """Forward pass of UnetUpBlock.

    x_nchw : (N, Cin, H, W)             float32
    w1     : (P, Cin, 3, 3), b1: (P,)   -- conv1  (PyTorch OIHW)
    w2     : (P, P, 3, 3),   b2: (P,)   -- conv2  (PyTorch OIHW)
    wt     : (P, Ch, 2, 2),  bt: (Ch,)  -- ConvTranspose2d (PyTorch IOHW), Ch = P//2
    returns: (N, Ch, 2H, 2W)            float32 (NCHW, matching PyTorch)
    """
    N, Cin, H, W = x_nchw.shape
    P = w1.shape[0]
    Ch = wt.shape[1]

    # ---- weight prep (tiny; banded matrices fold kx taps + column padding) --
    # band[u, v, k] = 1 iff input column u is the kx=k tap of output column v.
    u = jnp.arange(W)[:, None, None]
    v = jnp.arange(W)[None, :, None]
    k = jnp.arange(3)[None, None, :]
    band = (u - v + 1 == k).astype(jnp.float32)              # (W, W, 3)

    # conv1: OIHW -> (ky, kx, Cin, P), then band over (w_in, w_out); the ky
    # taps are stacked along the contraction axis (matches the in-kernel
    # [row h-1 | row h | row h+1] lane stacking).
    w1_k = jnp.transpose(w1, (2, 3, 1, 0))                   # (3, 3, Cin, P)
    B1 = jnp.einsum("uvk,ykcp->yucvp", band, w1_k).reshape(3 * W * Cin, W * P)
    b1_l = jnp.tile(b1, W).reshape(1, W * P)

    # Fold ConvTranspose2d(k=2, s=2) into conv2 (both linear, no ReLU between):
    #   wf[ky, kx, c, dy, dx, o] = sum_p w2[p, c, ky, kx] * wt[p, o, dy, dx]
    w2_k = jnp.transpose(w2, (2, 3, 1, 0))                   # (3, 3, P_in, P_out)
    wf = jnp.einsum("ykcp,poab->ykcabo", w2_k, wt)           # (3, 3, P, 2, 2, Ch)
    B2 = jnp.einsum("uvk,ykcabo->yucvabo", band, wf).reshape(3 * W * P,
                                                             W * 4 * Ch)
    b2f = bt[:, None, None] + jnp.einsum("p,poab->oab", b2, wt)   # (Ch, 2, 2)
    b2_l = jnp.tile(jnp.transpose(b2f, (1, 2, 0)).reshape(4 * Ch), W)
    b2_l = b2_l.reshape(1, W * 4 * Ch)

    # NCHW -> lane-dense (N, H, W*Cin). No jnp.pad pass: padding is implicit
    # in the banded weights / zero-halo row shifts inside the kernel.
    x_rows = jnp.transpose(x_nchw, (0, 2, 3, 1)).reshape(N, H, W * Cin)

    kernel = functools.partial(_unet_up_kernel, H=H)

    out = pl.pallas_call(
        kernel,
        out_shape=jax.ShapeDtypeStruct((N, H, W * 4 * Ch), jnp.float32),
        grid_spec=pltpu.PrefetchScalarGridSpec(
            num_scalar_prefetch=0,
            grid=(N,),
            in_specs=[
                pl.BlockSpec((1, H, W * Cin), lambda n: (n, 0, 0)),
                pl.BlockSpec((3 * W * Cin, W * P), lambda n: (0, 0)),
                pl.BlockSpec((1, W * P), lambda n: (0, 0)),
                pl.BlockSpec((3 * W * P, W * 4 * Ch), lambda n: (0, 0)),
                pl.BlockSpec((1, W * 4 * Ch), lambda n: (0, 0)),
            ],
            out_specs=pl.BlockSpec((1, H, W * 4 * Ch), lambda n: (n, 0, 0)),
        ),
        compiler_params=pltpu.CompilerParams(
            dimension_semantics=("parallel",)),
    )(x_rows, B1, b1_l, B2, b2_l)

    # Lanes are (w, dy, dx, c_out): de-interleave back to NCHW at 2x resolution.
    y = out.reshape(N, H, W, 2, 2, Ch)
    y = jnp.transpose(y, (0, 5, 1, 3, 2, 4)).reshape(N, Ch, 2 * H, 2 * W)
    return y


def _reference(x_nchw, w1, b1, w2, b2, wt, bt):
    """Pure-JAX reference matching PyTorch semantics (for validation)."""
    dn = ("NCHW", "OIHW", "NCHW")
    pad = [(1, 1), (1, 1)]
    h = lax.conv_general_dilated(x_nchw, w1, (1, 1), pad,
                                 dimension_numbers=dn) + b1[None, :, None, None]
    h = jnp.maximum(h, 0.0)
    h = lax.conv_general_dilated(h, w2, (1, 1), pad,
                                 dimension_numbers=dn) + b2[None, :, None, None]
    # ConvTranspose2d k=2 s=2: out[n,o,2h+a,2w+b] = sum_c h[n,c,h,w]*wt[c,o,a,b] + bt[o]
    N, _, H, W = h.shape
    Ch = wt.shape[1]
    up = jnp.einsum("nchw,coab->nohawb", h, wt).reshape(N, Ch, 2 * H, 2 * W)
    return up + bt[None, :, None, None]


if __name__ == "__main__":
    key = jax.random.PRNGKey(0)
    N, inplanes, planes, H, W = 2, 4, 8, 16, 16
    half = planes // 2

    ks = jax.random.split(key, 7)
    x = jax.random.normal(ks[0], (N, inplanes, H, W), jnp.float32)
    w1 = 0.1 * jax.random.normal(ks[1], (planes, inplanes, 3, 3), jnp.float32)
    b1 = 0.1 * jax.random.normal(ks[2], (planes,), jnp.float32)
    w2 = 0.1 * jax.random.normal(ks[3], (planes, planes, 3, 3), jnp.float32)
    b2 = 0.1 * jax.random.normal(ks[4], (planes,), jnp.float32)
    wt = 0.1 * jax.random.normal(ks[5], (planes, half, 2, 2), jnp.float32)
    bt = 0.1 * jax.random.normal(ks[6], (half,), jnp.float32)

    y = unet_up_block(x, w1, b1, w2, b2, wt, bt)
    y = jax.block_until_ready(y)

    y_ref = _reference(x, w1, b1, w2, b2, wt, bt)
    assert y.shape == (N, half, 2 * H, 2 * W), y.shape
    assert jnp.allclose(y, y_ref, atol=2e-4, rtol=2e-4), float(
        jnp.max(jnp.abs(y - y_ref)))

    print("KERNEL_OK")
</pallas_src>

<mosaic_0001>
module attributes {stable_mosaic.version = 11 : i64} {
  func.func @_unet_up_kernel(%arg0: i32, %arg1: memref<1x16x64xf32, #tpu.memory_space<vmem>>, %arg2: memref<192x128xf32, #tpu.memory_space<vmem>>, %arg3: memref<1x128xf32, #tpu.memory_space<vmem>>, %arg4: memref<384x256xf32, #tpu.memory_space<vmem>>, %arg5: memref<1x256xf32, #tpu.memory_space<vmem>>, %arg6: memref<1x16x256xf32, #tpu.memory_space<vmem>>) attributes {dimension_semantics = [#tpu.dimension_semantics<parallel>], iteration_bounds = array<i64: 2>, scalar_prefetch = 0 : i64, scratch_operands = 0 : i64, tpu.core_type = #tpu.core_type<tc>, window_params = [{transform_indices = @transform_0, window_bounds = array<i64: 1, 16, 64>}, {pipeline_mode = #tpu.pipeline_mode<synchronous>, transform_indices = @transform_1, window_bounds = array<i64: 192, 128>}, {pipeline_mode = #tpu.pipeline_mode<synchronous>, transform_indices = @transform_2, window_bounds = array<i64: 1, 128>}, {pipeline_mode = #tpu.pipeline_mode<synchronous>, transform_indices = @transform_3, window_bounds = array<i64: 384, 256>}, {pipeline_mode = #tpu.pipeline_mode<synchronous>, transform_indices = @transform_4, window_bounds = array<i64: 1, 256>}, {transform_indices = @transform_5, window_bounds = array<i64: 1, 16, 256>}]} {
    %c0 = arith.constant 0 : index
    %c0_0 = arith.constant 0 : index
    %c0_1 = arith.constant 0 : index
    %0 = vector.load %arg1[%c0, %c0_0, %c0_1] : memref<1x16x64xf32, #tpu.memory_space<vmem>>, vector<1x16x64xf32>
    %1 = vector.shape_cast %0 : vector<1x16x64xf32> to vector<16x64xf32>
    %cst = arith.constant 0.000000e+00 : f32
    %2 = vector.broadcast %cst : f32 to vector<1x64xf32>
    %3 = vector.extract_strided_slice %1 {offsets = [0, 0], sizes = [15, 64], strides = [1, 1]} : vector<16x64xf32> to vector<15x64xf32>
    %4 = tpu.concatenate %2, %3 in 0 : vector<1x64xf32>, vector<15x64xf32> -> vector<16x64xf32>
    %5 = vector.extract_strided_slice %1 {offsets = [1, 0], sizes = [15, 64], strides = [1, 1]} : vector<16x64xf32> to vector<15x64xf32>
    %6 = tpu.concatenate %5, %2 in 0 : vector<15x64xf32>, vector<1x64xf32> -> vector<16x64xf32>
    %7 = tpu.concatenate %4, %1, %6 in 1 : vector<16x64xf32>, vector<16x64xf32>, vector<16x64xf32> -> vector<16x192xf32>
    %c0_2 = arith.constant 0 : index
    %c0_3 = arith.constant 0 : index
    %8 = vector.load %arg2[%c0_2, %c0_3] : memref<192x128xf32, #tpu.memory_space<vmem>>, vector<192x128xf32>
    %cst_4 = arith.constant dense<0.000000e+00> : vector<16x128xf32>
    %9 = tpu.matmul %7, %8, %cst_4 {dimension_numbers = #tpu.dot_dimension_numbers<[1], [0], [0], [1], [0, 0, 1, 1], [], []>} : vector<16x192xf32>, vector<192x128xf32>, vector<16x128xf32> -> vector<16x128xf32>
    %c0_5 = arith.constant 0 : index
    %c0_6 = arith.constant 0 : index
    %10 = vector.load %arg3[%c0_5, %c0_6] : memref<1x128xf32, #tpu.memory_space<vmem>>, vector<1x128xf32>
    %11 = vector.broadcast %10 : vector<1x128xf32> to vector<16x128xf32>
    %12 = arith.addf %9, %11 : vector<16x128xf32>
    %cst_7 = arith.constant 0.000000e+00 : f32
    %13 = vector.broadcast %cst_7 : f32 to vector<16x128xf32>
    %14 = arith.maximumf %12, %13 : vector<16x128xf32>
    %cst_8 = arith.constant 0.000000e+00 : f32
    %15 = vector.broadcast %cst_8 : f32 to vector<1x128xf32>
    %16 = vector.extract_strided_slice %14 {offsets = [0, 0], sizes = [15, 128], strides = [1, 1]} : vector<16x128xf32> to vector<15x128xf32>
    %17 = tpu.concatenate %15, %16 in 0 : vector<1x128xf32>, vector<15x128xf32> -> vector<16x128xf32>
    %18 = vector.extract_strided_slice %14 {offsets = [1, 0], sizes = [15, 128], strides = [1, 1]} : vector<16x128xf32> to vector<15x128xf32>
    %19 = tpu.concatenate %18, %15 in 0 : vector<15x128xf32>, vector<1x128xf32> -> vector<16x128xf32>
    %20 = tpu.concatenate %17, %14, %19 in 1 : vector<16x128xf32>, vector<16x128xf32>, vector<16x128xf32> -> vector<16x384xf32>
    %c0_9 = arith.constant 0 : index
    %c0_10 = arith.constant 0 : index
    %21 = vector.load %arg4[%c0_9, %c0_10] : memref<384x256xf32, #tpu.memory_space<vmem>>, vector<384x256xf32>
    %cst_11 = arith.constant dense<0.000000e+00> : vector<16x256xf32>
    %22 = tpu.matmul %20, %21, %cst_11 {dimension_numbers = #tpu.dot_dimension_numbers<[1], [0], [0], [1], [0, 0, 1, 1], [], []>} : vector<16x384xf32>, vector<384x256xf32>, vector<16x256xf32> -> vector<16x256xf32>
    %c0_12 = arith.constant 0 : index
    %c0_13 = arith.constant 0 : index
    %23 = vector.load %arg5[%c0_12, %c0_13] : memref<1x256xf32, #tpu.memory_space<vmem>>, vector<1x256xf32>
    %24 = vector.broadcast %23 : vector<1x256xf32> to vector<16x256xf32>
    %25 = arith.addf %22, %24 : vector<16x256xf32>
    %c0_14 = arith.constant 0 : index
    %c0_15 = arith.constant 0 : index
    %c0_16 = arith.constant 0 : index
    %26 = vector.load %arg6[%c0_14, %c0_15, %c0_16] : memref<1x16x256xf32, #tpu.memory_space<vmem>>, vector<1x16x256xf32>
    %27 = vector.shape_cast %26 : vector<1x16x256xf32> to vector<16x256xf32>
    %28 = vector.shape_cast %25 : vector<16x256xf32> to vector<1x16x256xf32>
    tpu.vector_store %arg6[%c0_14, %c0_15, %c0_16], %28 {strides = array<i32>} : memref<1x16x256xf32, #tpu.memory_space<vmem>>, vector<1x16x256xf32>,
    return
  }
  func.func @transform_0(%arg0: i32) -> (i32, i32, i32) {
    %c0_i32 = arith.constant 0 : i32
    %c0_i32_0 = arith.constant 0 : i32
    %c0_i32_1 = arith.constant 0 : i32
    return %arg0, %c0_i32, %c0_i32_0 : i32, i32, i32
  }
  func.func @transform_1(%arg0: i32) -> (i32, i32) {
    %c0_i32 = arith.constant 0 : i32
    %c0_i32_0 = arith.constant 0 : i32
    %c0_i32_1 = arith.constant 0 : i32
    return %c0_i32, %c0_i32_0 : i32, i32
  }
  func.func @transform_2(%arg0: i32) -> (i32, i32) {
    %c0_i32 = arith.constant 0 : i32
    %c0_i32_0 = arith.constant 0 : i32
    %c0_i32_1 = arith.constant 0 : i32
    return %c0_i32, %c0_i32_0 : i32, i32
  }
  func.func @transform_3(%arg0: i32) -> (i32, i32) {
    %c0_i32 = arith.constant 0 : i32
    %c0_i32_0 = arith.constant 0 : i32
    %c0_i32_1 = arith.constant 0 : i32
    return %c0_i32, %c0_i32_0 : i32, i32
  }
  func.func @transform_4(%arg0: i32) -> (i32, i32) {
    %c0_i32 = arith.constant 0 : i32
    %c0_i32_0 = arith.constant 0 : i32
    %c0_i32_1 = arith.constant 0 : i32
    return %c0_i32, %c0_i32_0 : i32, i32
  }
  func.func @transform_5(%arg0: i32) -> (i32, i32, i32) {
    %c0_i32 = arith.constant 0 : i32
    %c0_i32_0 = arith.constant 0 : i32
    %c0_i32_1 = arith.constant 0 : i32
    return %arg0, %c0_i32, %c0_i32_0 : i32, i32, i32
  }
}

</mosaic_0001>

<llo_original>
// kernel: tpu_custom_call.1
$region0: #{tpu_custom_call.1}
  #allocation0 [shape = 'u32[]', space=smem, size = 0x4, offset = 0x4, fixed_abs, tag = 'smem constant byte address 0x4 - core index']
  #allocation1 [shape = 'u32[72,128]{1,0:T(1,128)}', space=vmem, size = 0x9000, scoped, tag = 'internal scratch']
  %s0 = inlined_call_operand.hbm [shape: f32[2,16,64], index: 0, kind: input, shape index: {}]
  %s1 = inlined_call_operand.hbm [shape: f32[192,128], index: 1, kind: input, shape index: {}]
  %s2 = inlined_call_operand.vmem [shape: f32[1,128], index: 2, kind: input, shape index: {}]
  %s3 = inlined_call_operand.hbm [shape: f32[384,256], index: 3, kind: input, shape index: {}]
  %s4 = inlined_call_operand.vmem [shape: f32[1,256], index: 4, kind: input, shape index: {}]
  %s5 = inlined_call_operand.hbm [shape: f32[2,16,256], index: 5, kind: output, shape index: {}]
  %s6 = sld [smem:[#allocation0]]
  $region65: #{tpu_custom_call.1} parent=0
    _
  %s8 = ssub.s32 1, %s6
  %s9 = scalar_select 0, %s8, %s6
  $region1: #{tpu_custom_call.1} parent=0
    #allocation2 [shape = 'u8[16384]{0}', space=vmem, size = 0x4000, scoped, tag = 'input window, operand 0']
    #allocation3 [shape = 's32[2]{0}', space=sflag, size = 0x8, scoped, tag = 'scoped memory for tpu_custom_call.1']
    #allocation4 [shape = 's32[2]{0}', space=sflag, size = 0x8, scoped, tag = 'scoped memory for tpu_custom_call.1']
    #allocation5 [shape = 'u8[98304]{0}', space=vmem, size = 0x18000, scoped, tag = 'input window, operand 1, single buffered']
    #allocation6 [shape = 's32[1]{0}', space=sflag, size = 0x4, scoped, tag = 'scoped memory for tpu_custom_call.1']
    #allocation7 [shape = 'u8[393216]{0}', space=vmem, size = 0x60000, scoped, tag = 'input window, operand 3, single buffered']
    #allocation8 [shape = 'u8[32768]{0}', space=vmem, size = 0x8000, scoped, tag = 'output window, operand 0']
    %10 = vsyncpa [#allocation3], 0
    %s11 = scalar_lea.sflag [#allocation3], 1
    %12 = vsyncpa %s11, 0
    %13 = vsyncpa [#allocation6], 0
    %14 = vsyncpa [#allocation4], 0
    %s15 = scalar_lea.sflag [#allocation4], 1
    %16 = vsyncpa %s15, 0
    loop: start=0, step=1, limit=4
    $region2: #{tpu_custom_call.1} parent=1 // loop_pre_header
      _
    $region3: #{tpu_custom_call.1} parent=1 // loop_header
      %s18 = sphi 0, %s22
      %p19 = scmp.ge.s32.totalorder %s18, 4
      %s28 = sphi 0, %s30
      %s31 = sphi 0, %s28
      %s32 = sphi 0, %s31
      %s48 = sphi 0, %s32
      %s52 = sphi 0, %s52
      %s54 = sphi 0, %s52
      %s55 = sphi 0, %s54
      %s69 = sphi 0, %s55
      %s73 = sphi 0, %s73
      %s75 = sphi 0, %s73
      %s76 = sphi 0, %s75
      %s90 = sphi 0, %s76
      %s94 = sphi 0, %s94
      %s96 = sphi 0, %s94
      %s97 = sphi 0, %s96
      %s111 = sphi 0, %s97
      %s115 = sphi 0, %s115
      %s117 = sphi 0, %s115
      %s118 = sphi 0, %s117
      %s132 = sphi 0, %s118
      %s138 = sphi 0, %s140
      %s141 = sphi 0, %s138
      %s142 = sphi 0, %s141
      %s158 = sphi 0, %s142
    $region4: #{tpu_custom_call.1} parent=1 // loop_header_branch
      %21 = sbr.rel (%p19) target = $region8
    $region5: #{tpu_custom_call.1} parent=1 // loop_body
      %s23 = ssub.s32 %s18, 1
      %s24 = ssub.s32 %s18, 2
      %s25 = sadd.s32 %s18, 1
      %s26 = ssub.s32 %s18, %s25
      %p27 = scmp.eq.s32.totalorder %s26, 0
      %s29 = sadd.s32 %s28, 1
      %s30 = scalar_select %p27, %s28, %s29
      %p33 = pneg %p27
      %p34 = scmp.eq.s32.totalorder %s18, 1
      %p35 = por %p33, %p34
      %p36 = scmp.ne.s32.totalorder %s28, %s31
      %p37 = scmp.eq.s32.totalorder %s18, 0
      %p38 = por %p36, %p37
      %p39 = scmp.ne.s32.totalorder %s28, %s31
      %p40 = scmp.eq.s32.totalorder %s23, 1
      %p41 = por %p39, %p40
      %p42 = scmp.ne.s32.totalorder %s31, %s32
      %p43 = scmp.eq.s32.totalorder %s23, 0
      %p44 = por %p42, %p43
      %p45 = scmp.ne.s32.totalorder %s31, %s32
      %p46 = scmp.eq.s32.totalorder %s24, 1
      %p47 = por %p45, %p46
      %p49 = scmp.ne.s32.totalorder %s32, %s48
      %p50 = scmp.eq.s32.totalorder %s24, 0
      %p51 = por %p49, %p50
      %s53 = sadd.s32 %s52, 1
      %p56 = scmp.eq.s32.totalorder %s18, 1
      %p57 = scmp.ne.s32.totalorder %s52, %s54
      %p58 = scmp.eq.s32.totalorder %s18, 0
      %p59 = por %p57, %p58
      %p60 = scmp.ne.s32.totalorder %s52, %s54
      %p61 = scmp.eq.s32.totalorder %s23, 1
      %p62 = por %p60, %p61
      %p63 = scmp.ne.s32.totalorder %s54, %s55
      %p64 = scmp.eq.s32.totalorder %s23, 0
      %p65 = por %p63, %p64
      %p66 = scmp.ne.s32.totalorder %s54, %s55
      %p67 = scmp.eq.s32.totalorder %s24, 1
      %p68 = por %p66, %p67
      %p70 = scmp.ne.s32.totalorder %s55, %s69
      %p71 = scmp.eq.s32.totalorder %s24, 0
      %p72 = por %p70, %p71
      %s74 = sadd.s32 %s73, 1
      %p77 = scmp.eq.s32.totalorder %s18, 1
      %p78 = scmp.ne.s32.totalorder %s73, %s75
      %p79 = scmp.eq.s32.totalorder %s18, 0
      %p80 = por %p78, %p79
      %p81 = scmp.ne.s32.totalorder %s73, %s75
      %p82 = scmp.eq.s32.totalorder %s23, 1
      %p83 = por %p81, %p82
      %p84 = scmp.ne.s32.totalorder %s75, %s76
      %p85 = scmp.eq.s32.totalorder %s23, 0
      %p86 = por %p84, %p85
      %p87 = scmp.ne.s32.totalorder %s75, %s76
      %p88 = scmp.eq.s32.totalorder %s24, 1
      %p89 = por %p87, %p88
      %p91 = scmp.ne.s32.totalorder %s76, %s90
      %p92 = scmp.eq.s32.totalorder %s24, 0
      %p93 = por %p91, %p92
      %s95 = sadd.s32 %s94, 1
      %p98 = scmp.eq.s32.totalorder %s18, 1
      %p99 = scmp.ne.s32.totalorder %s94, %s96
      %p100 = scmp.eq.s32.totalorder %s18, 0
      %p101 = por %p99, %p100
      %p102 = scmp.ne.s32.totalorder %s94, %s96
      %p103 = scmp.eq.s32.totalorder %s23, 1
      %p104 = por %p102, %p103
      %p105 = scmp.ne.s32.totalorder %s96, %s97
      %p106 = scmp.eq.s32.totalorder %s23, 0
      %p107 = por %p105, %p106
      %p108 = scmp.ne.s32.totalorder %s96, %s97
      %p109 = scmp.eq.s32.totalorder %s24, 1
      %p110 = por %p108, %p109
      %p112 = scmp.ne.s32.totalorder %s97, %s111
      %p113 = scmp.eq.s32.totalorder %s24, 0
      %p114 = por %p112, %p113
      %s116 = sadd.s32 %s115, 1
      %p119 = scmp.eq.s32.totalorder %s18, 1
      %p120 = scmp.ne.s32.totalorder %s115, %s117
      %p121 = scmp.eq.s32.totalorder %s18, 0
      %p122 = por %p120, %p121
      %p123 = scmp.ne.s32.totalorder %s115, %s117
      %p124 = scmp.eq.s32.totalorder %s23, 1
      %p125 = por %p123, %p124
      %p126 = scmp.ne.s32.totalorder %s117, %s118
      %p127 = scmp.eq.s32.totalorder %s23, 0
      %p128 = por %p126, %p127
      %p129 = scmp.ne.s32.totalorder %s117, %s118
      %p130 = scmp.eq.s32.totalorder %s24, 1
      %p131 = por %p129, %p130
      %p133 = scmp.ne.s32.totalorder %s118, %s132
      %p134 = scmp.eq.s32.totalorder %s24, 0
      %p135 = por %p133, %p134
      %s136 = ssub.s32 %s18, %s25
      %p137 = scmp.eq.s32.totalorder %s136, 0
      %s139 = sadd.s32 %s138, 1
      %s140 = scalar_select %p137, %s138, %s139
      %p143 = pneg %p137
      %p144 = scmp.eq.s32.totalorder %s18, 1
      %p145 = por %p143, %p144
      %p146 = scmp.ne.s32.totalorder %s138, %s141
      %p147 = scmp.eq.s32.totalorder %s18, 0
      %p148 = por %p146, %p147
      %p149 = scmp.ne.s32.totalorder %s138, %s141
      %p150 = scmp.eq.s32.totalorder %s23, 1
      %p151 = por %p149, %p150
      %p152 = scmp.ne.s32.totalorder %s141, %s142
      %p153 = scmp.eq.s32.totalorder %s23, 0
      %p154 = por %p152, %p153
      %p155 = scmp.ne.s32.totalorder %s141, %s142
      %p156 = scmp.eq.s32.totalorder %s24, 1
      %p157 = por %p155, %p156
      %p159 = scmp.ne.s32.totalorder %s142, %s158
      %p160 = scmp.eq.s32.totalorder %s24, 0
      %p161 = por %p159, %p160
      %p162 = scmp.le.s32.totalorder 1, %s18
      %p163 = scmp.lt.s32.totalorder %s18, 3
      %p164 = pnand %p162, %p163
      %p165 = pneg %p164
      // Predicated region
      $region9: #{tpu_custom_call.1} parent=5 // pred_check
        _
      $region10: #{tpu_custom_call.1} parent=5 // pred_check_branch
        %167 = sbr.rel (%p164) target = $region12
      $region11: #{tpu_custom_call.1} parent=5 // pred_region
        %s168 = ssub.s32 %s18, 1
        // Predicated region
        $region13: #{tpu_custom_call.1} parent=11 // pred_check
          %p169 = pneg %p65
        $region14: #{tpu_custom_call.1} parent=11 // pred_check_branch
          %171 = sbr.rel (%p169) target = $region16
        $region15: #{tpu_custom_call.1} parent=11 // pred_region
          %173 = vsyncadd [#allocation6], 0
          %s174 = sshll.u32 %s1, 4
          %s175 = int_to_ptr.hbm [resolvable:$true] %s174
          %s176 = sshll.u32 [#allocation5], 4
          %s177 = int_to_ptr.vmem [resolvable:$true] %s176
          %182 = dma.hbm_to_vmem [thread:$0]  %s175, 3072, %s177, [#allocation6], 128, 128, 8
        $region16: #{tpu_custom_call.1} parent=11 // pred_fallthru
          _
        // Predicated region
        $region17: #{tpu_custom_call.1} parent=11 // pred_check
          %p183 = pneg %p86
        $region18: #{tpu_custom_call.1} parent=11 // pred_check_branch
          %185 = sbr.rel (%p183) target = $region20
        $region19: #{tpu_custom_call.1} parent=11 // pred_region
          _
        $region20: #{tpu_custom_call.1} parent=11 // pred_fallthru
          _
        // Predicated region
        $region21: #{tpu_custom_call.1} parent=11 // pred_check
          %p186 = pneg %p107
        $region22: #{tpu_custom_call.1} parent=11 // pred_check_branch
          %188 = sbr.rel (%p186) target = $region24
        $region23: #{tpu_custom_call.1} parent=11 // pred_region
          %190 = vsyncadd [#allocation6], 0
          %s191 = sshll.u32 %s3, 4
          %s192 = int_to_ptr.hbm [resolvable:$true] %s191
          %s193 = sshll.u32 [#allocation7], 4
          %s194 = int_to_ptr.vmem [resolvable:$true] %s193
          %199 = dma.hbm_to_vmem [thread:$0]  %s192, 12288, %s194, [#allocation6], 256, 256, 16
        $region24: #{tpu_custom_call.1} parent=11 // pred_fallthru
          _
        // Predicated region
        $region25: #{tpu_custom_call.1} parent=11 // pred_check
          %p200 = pneg %p128
        $region26: #{tpu_custom_call.1} parent=11 // pred_check_branch
          %202 = sbr.rel (%p200) target = $region28
        $region27: #{tpu_custom_call.1} parent=11 // pred_region
          _
        $region28: #{tpu_custom_call.1} parent=11 // pred_fallthru
          _
      $region12: #{tpu_custom_call.1} parent=5 // pred_fallthru
        _
      %p203 = scmp.lt.s32.totalorder %s18, 2
      // Predicated region
      $region29: #{tpu_custom_call.1} parent=5 // pred_check
        %p204 = pneg %p203
      $region30: #{tpu_custom_call.1} parent=5 // pred_check_branch
        %206 = sbr.rel (%p204) target = $region32
      $region31: #{tpu_custom_call.1} parent=5 // pred_region
        // Predicated region
        $region33: #{tpu_custom_call.1} parent=31 // pred_check
          %p207 = pneg %p38
        $region34: #{tpu_custom_call.1} parent=31 // pred_check_branch
          %209 = sbr.rel (%p207) target = $region36
        $region35: #{tpu_custom_call.1} parent=31 // pred_region
          %s210 = sand.u32 %s28, 1
          %s211 = scalar_lea.sflag [#allocation3], %s210
          %s212 = sand.u32 %s28, 1
          %s213 = smul.addr %s212, 16
          %s214 = scalar_lea.vmem [#allocation2], %s213
          %216 = vsyncadd %s211, 0
          %s217 = smul.addr %s18, 2
          %s218 = smul.addr %s217, 8
          %s219 = scalar_lea.hbm %s0, %s218
          %s220 = sshll.u32 %s219, 4
          %s221 = int_to_ptr.hbm [resolvable:$true] %s220
          %s222 = sshll.u32 %s214, 4
          %s223 = int_to_ptr.vmem [resolvable:$true] %s222
          %228 = dma.hbm_to_vmem [thread:$0]  %s221, 256, %s223, %s211, 128, 128, 8
        $region36: #{tpu_custom_call.1} parent=31 // pred_fallthru
          _
      $region32: #{tpu_custom_call.1} parent=5 // pred_fallthru
        _
      %p229 = scmp.le.s32.totalorder 1, %s18
      %p230 = scmp.lt.s32.totalorder %s18, 3
      %p231 = pnand %p229, %p230
      %p232 = pneg %p231
      // Predicated region
      $region37: #{tpu_custom_call.1} parent=5 // pred_check
        _
      $region38: #{tpu_custom_call.1} parent=5 // pred_check_branch
        %234 = sbr.rel (%p231) target = $region40
      $region39: #{tpu_custom_call.1} parent=5 // pred_region
        %s235 = ssub.s32 %s18, 1
        %s236 = sand.u32 %s31, 1
        %s237 = scalar_lea.sflag [#allocation3], %s236
        %s238 = sand.u32 %s31, 1
        %s239 = smul.addr %s238, 16
        %s240 = scalar_lea.vmem [#allocation2], %s239
        // Predicated region
        $region41: #{tpu_custom_call.1} parent=39 // pred_check
          %p241 = pneg %p44
        $region42: #{tpu_custom_call.1} parent=39 // pred_check_branch
          %243 = sbr.rel (%p241) target = $region44
        $region43: #{tpu_custom_call.1} parent=39 // pred_region
          %245 = dma.done %s237, 256
        $region44: #{tpu_custom_call.1} parent=39 // pred_fallthru
          _
        // Predicated region
        $region45: #{tpu_custom_call.1} parent=39 // pred_check
          %p246 = pneg %p65
        $region46: #{tpu_custom_call.1} parent=39 // pred_check_branch
          %248 = sbr.rel (%p246) target = $region48
        $region47: #{tpu_custom_call.1} parent=39 // pred_region
          %250 = dma.done [#allocation6], 3072
        $region48: #{tpu_custom_call.1} parent=39 // pred_fallthru
          _
        // Predicated region
        $region49: #{tpu_custom_call.1} parent=39 // pred_check
          %p251 = pneg %p107
        $region50: #{tpu_custom_call.1} parent=39 // pred_check_branch
          %253 = sbr.rel (%p251) target = $region52
        $region51: #{tpu_custom_call.1} parent=39 // pred_region
          %255 = dma.done [#allocation6], 12288
        $region52: #{tpu_custom_call.1} parent=39 // pred_fallthru
          _
        %s256 = sand.u32 %s31, 1
        %s257 = scalar_lea.sflag [#allocation3], %s256
        %s258 = sand.u32 %s31, 1
        %s259 = smul.addr %s258, 16
        %s260 = scalar_lea.vmem [#allocation2], %s259
        %p261 = pneg %p44
        %p262 = pneg %p41
        %p263 = pneg %p65
        %p264 = pneg %p62
        %p265 = pneg %p86
        %p266 = pneg %p83
        %p267 = pneg %p107
        %p268 = pneg %p104
        %p269 = pneg %p128
        %p270 = pneg %p125
        %p271 = pneg %p154
        %p272 = pneg %p151
        %s273 = sand.u32 %s141, 1
        %s274 = scalar_lea.sflag [#allocation4], %s273
        %s275 = sand.u32 %s141, 1
        %s276 = smul.addr %s275, 32
        %s277 = scalar_lea.vmem [#allocation8], %s276
        %v278 = vld [vmem:[%s240] sm:$0xff]
        %v279 = vld [vmem:[%s240 + $0x8] sm:$0xff]
        %vm282 = vcmask 1040384
        %v283 = vrot.slane %v278, 7
        %v284 = vrot.slane %v279, 7
        %v285 = vsel %vm282, %v283, %v284
        %v288 = vsel %vm282, 0.0, %v283
        %vm289 = vcmask 1046528
        %v290 = vrot.slane %v278, 1
        %v291 = vrot.slane %v279, 1
        %v292 = vsel %vm289, %v290, %v291
        %v294 = vsel %vm289, %v291, 0.0
        %295 = vrot.lane.b32.xlu0 %v278, 64
        %v296 = vpop.permute.xlu0 %295
        %297 = vrot.lane.b32.xlu0 %v279, 64
        %v298 = vpop.permute.xlu0 %297
        %vm301 = vcmask 523264
        %v302 = vsel %vm301, %v288, %v296
        %v303 = vsel %vm301, %v285, %v298
        %v304 = vld [vmem:[#allocation5] sm:$0xff]
        %v305 = vld [vmem:[#allocation5 + $0x8] sm:$0xff]
        %v306 = vld [vmem:[#allocation5 + $0x10] sm:$0xff]
        %v307 = vld [vmem:[#allocation5 + $0x18] sm:$0xff]
        %v308 = vld [vmem:[#allocation5 + $0x20] sm:$0xff]
        %v309 = vld [vmem:[#allocation5 + $0x28] sm:$0xff]
        %v310 = vld [vmem:[#allocation5 + $0x30] sm:$0xff]
        %v311 = vld [vmem:[#allocation5 + $0x38] sm:$0xff]
        %v312 = vld [vmem:[#allocation5 + $0x40] sm:$0xff]
        %v313 = vld [vmem:[#allocation5 + $0x48] sm:$0xff]
        %v314 = vld [vmem:[#allocation5 + $0x50] sm:$0xff]
        %v315 = vld [vmem:[#allocation5 + $0x58] sm:$0xff]
        %v316 = vld [vmem:[#allocation5 + $0x60] sm:$0xff]
        %v317 = vld [vmem:[#allocation5 + $0x68] sm:$0xff]
        %v318 = vld [vmem:[#allocation5 + $0x70] sm:$0xff]
        %v319 = vld [vmem:[#allocation5 + $0x78] sm:$0xff]
        %v320 = vld [vmem:[#allocation5 + $0x80] sm:$0xff]
        %v321 = vld [vmem:[#allocation5 + $0x88] sm:$0xff]
        %v322 = vld [vmem:[#allocation5 + $0x90] sm:$0xff]
        %v323 = vld [vmem:[#allocation5 + $0x98] sm:$0xff]
        %v324 = vld [vmem:[#allocation5 + $0xa0] sm:$0xff]
        %v325 = vld [vmem:[#allocation5 + $0xa8] sm:$0xff]
        %v326 = vld [vmem:[#allocation5 + $0xb0] sm:$0xff]
        %v327 = vld [vmem:[#allocation5 + $0xb8] sm:$0xff]
        %v328 = vld [vmem:[%s2] sm:$0x1]
        %v330 = vperm.slane %v328, 0
        %v332 = vsel %vm301, %v292, 0
        %v335 = vsel %vm301, %v294, 0
        %337 = vmatpush.msra.mxu0 %v319
        %338 = vmatpush.msra.mxu0 %v318
        %339 = vmatpush.msra.mxu0 %v317
        %340 = vmatpush.msra.mxu0 %v316
        %341 = vmatpush.msra.mxu0 %v315
        %342 = vmatpush.msra.mxu0 %v314
        %343 = vmatpush.msra.mxu0 %v313
        %344 = vmatpush.msra.mxu0 %v312
        %345 = vmatpush.msra.mxu0 %v311
        %346 = vmatpush.msra.mxu0 %v310
        %347 = vmatpush.msra.mxu0 %v309
        %348 = vmatpush.msra.mxu0 %v308
        %349 = vmatpush.msra.mxu0 %v307
        %350 = vmatpush.msra.mxu0 %v306
        %351 = vmatpush.msra.mxu0 %v305
        %352 = vmatpush.msra.mxu0 %v304
        %353 = vmatmul.f32.gmra.mxu0 %v302
        %v354 = vpop.f32.mrf.mxu0
        %v355 = vadd.f32 %v330, %v354
        %356 = vmatmul.f32.gmra.mxu0 %v303
        %v357 = vpop.f32.mrf.mxu0
        %v358 = vadd.f32 %v330, %v357
        %359 = vdwg.mxu0
        %360 = vmatpush.msra.mxu0 0.0
        %361 = vmatpush.msra.mxu0 0.0
        %362 = vmatpush.msra.mxu0 0.0
        %363 = vmatpush.msra.mxu0 0.0
        %364 = vmatpush.msra.mxu0 0.0
        %365 = vmatpush.msra.mxu0 0.0
        %366 = vmatpush.msra.mxu0 0.0
        %367 = vmatpush.msra.mxu0 0.0
        %368 = vmatpush.msra.mxu0 %v327
        %369 = vmatpush.msra.mxu0 %v326
        %370 = vmatpush.msra.mxu0 %v325
        %371 = vmatpush.msra.mxu0 %v324
        %372 = vmatpush.msra.mxu0 %v323
        %373 = vmatpush.msra.mxu0 %v322
        %374 = vmatpush.msra.mxu0 %v321
        %375 = vmatpush.msra.mxu0 %v320
        %376 = vmatmul.f32.gmra.mxu0 %v332
        %v377 = vpop.f32.mrf.mxu0
        %v378 = vadd.f32 %v355, %v377
        %379 = vmatmul.f32.gmra.mxu0 %v335
        %v380 = vpop.f32.mrf.mxu0
        %v381 = vadd.f32 %v358, %v380
        %382 = vdwg.mxu0
        %v383 = vmax.f32 %v378, 0.0
        %v384 = vmax.f32 %v381, 0.0
        %v387 = vrot.slane %v383, 7
        %v388 = vrot.slane %v384, 7
        %v389 = vsel %vm282, %v387, %v388
        %v392 = vsel %vm282, 0.0, %v387
        %v393 = vrot.slane %v383, 1
        %v394 = vrot.slane %v384, 1
        %v395 = vsel %vm289, %v393, %v394
        %v398 = vsel %vm289, %v394, 0.0
        %v399 = vld [vmem:[#allocation7] sm:$0xff]
        %v400 = vld [vmem:[#allocation7 + $0x8] sm:$0xff]
        %v401 = vld [vmem:[#allocation7 + $0x10] sm:$0xff]
        %v402 = vld [vmem:[#allocation7 + $0x18] sm:$0xff]
        %v403 = vld [vmem:[#allocation7 + $0x20] sm:$0xff]
        %v404 = vld [vmem:[#allocation7 + $0x28] sm:$0xff]
        %v405 = vld [vmem:[#allocation7 + $0x30] sm:$0xff]
        %v406 = vld [vmem:[#allocation7 + $0x38] sm:$0xff]
        %v407 = vld [vmem:[#allocation7 + $0x40] sm:$0xff]
        %v408 = vld [vmem:[#allocation7 + $0x48] sm:$0xff]
        %v409 = vld [vmem:[#allocation7 + $0x50] sm:$0xff]
        %v410 = vld [vmem:[#allocation7 + $0x58] sm:$0xff]
        %v411 = vld [vmem:[#allocation7 + $0x60] sm:$0xff]
        %v412 = vld [vmem:[#allocation7 + $0x68] sm:$0xff]
        %v413 = vld [vmem:[#allocation7 + $0x70] sm:$0xff]
        %v414 = vld [vmem:[#allocation7 + $0x78] sm:$0xff]
        %v415 = vld [vmem:[#allocation7 + $0x80] sm:$0xff]
        %v416 = vld [vmem:[#allocation7 + $0x88] sm:$0xff]
        %v417 = vld [vmem:[#allocation7 + $0x90] sm:$0xff]
        %v418 = vld [vmem:[#allocation7 + $0x98] sm:$0xff]
        %v419 = vld [vmem:[#allocation7 + $0xa0] sm:$0xff]
        %v420 = vld [vmem:[#allocation7 + $0xa8] sm:$0xff]
        %v421 = vld [vmem:[#allocation7 + $0xb0] sm:$0xff]
        %v422 = vld [vmem:[#allocation7 + $0xb8] sm:$0xff]
        %v423 = vld [vmem:[#allocation7 + $0xc0] sm:$0xff]
        %v424 = vld [vmem:[#allocation7 + $0xc8] sm:$0xff]
        %v425 = vld [vmem:[#allocation7 + $0xd0] sm:$0xff]
        %v426 = vld [vmem:[#allocation7 + $0xd8] sm:$0xff]
        %v427 = vld [vmem:[#allocation7 + $0xe0] sm:$0xff]
        %v428 = vld [vmem:[#allocation7 + $0xe8] sm:$0xff]
        %v429 = vld [vmem:[#allocation7 + $0xf0] sm:$0xff]
        %v430 = vld [vmem:[#allocation7 + $0xf8] sm:$0xff]
        %v431 = vld [vmem:[#allocation7 + $0x100] sm:$0xff]
        %v432 = vld [vmem:[#allocation7 + $0x108] sm:$0xff]
        %v433 = vld [vmem:[#allocation7 + $0x110] sm:$0xff]
        %v434 = vld [vmem:[#allocation7 + $0x118] sm:$0xff]
        %v435 = vld [vmem:[#allocation7 + $0x120] sm:$0xff]
        %v436 = vld [vmem:[#allocation7 + $0x128] sm:$0xff]
        %v437 = vld [vmem:[#allocation7 + $0x130] sm:$0xff]
        %v438 = vld [vmem:[#allocation7 + $0x138] sm:$0xff]
        %v439 = vld [vmem:[#allocation7 + $0x140] sm:$0xff]
        %v440 = vld [vmem:[#allocation7 + $0x148] sm:$0xff]
        %v441 = vld [vmem:[#allocation7 + $0x150] sm:$0xff]
        %v442 = vld [vmem:[#allocation7 + $0x158] sm:$0xff]
        %v443 = vld [vmem:[#allocation7 + $0x160] sm:$0xff]
        %v444 = vld [vmem:[#allocation7 + $0x168] sm:$0xff]
        %v445 = vld [vmem:[#allocation7 + $0x170] sm:$0xff]
        %v446 = vld [vmem:[#allocation7 + $0x178] sm:$0xff]
        %v447 = vld [vmem:[#allocation7 + $0x180] sm:$0xff]
        %v448 = vld [vmem:[#allocation7 + $0x188] sm:$0xff]
        %v449 = vld [vmem:[#allocation7 + $0x190] sm:$0xff]
        %v450 = vld [vmem:[#allocation7 + $0x198] sm:$0xff]
        %v451 = vld [vmem:[#allocation7 + $0x1a0] sm:$0xff]
        %v452 = vld [vmem:[#allocation7 + $0x1a8] sm:$0xff]
        %v453 = vld [vmem:[#allocation7 + $0x1b0] sm:$0xff]
        %v454 = vld [vmem:[#allocation7 + $0x1b8] sm:$0xff]
        %v455 = vld [vmem:[#allocation7 + $0x1c0] sm:$0xff]
        %v456 = vld [vmem:[#allocation7 + $0x1c8] sm:$0xff]
        %v457 = vld [vmem:[#allocation7 + $0x1d0] sm:$0xff]
        %v458 = vld [vmem:[#allocation7 + $0x1d8] sm:$0xff]
        %v459 = vld [vmem:[#allocation7 + $0x1e0] sm:$0xff]
        %v460 = vld [vmem:[#allocation7 + $0x1e8] sm:$0xff]
        %v461 = vld [vmem:[#allocation7 + $0x1f0] sm:$0xff]
        %v462 = vld [vmem:[#allocation7 + $0x1f8] sm:$0xff]
        %v463 = vld [vmem:[#allocation7 + $0x200] sm:$0xff]
        %v464 = vld [vmem:[#allocation7 + $0x208] sm:$0xff]
        %v465 = vld [vmem:[#allocation7 + $0x210] sm:$0xff]
        %v466 = vld [vmem:[#allocation7 + $0x218] sm:$0xff]
        %v467 = vld [vmem:[#allocation7 + $0x220] sm:$0xff]
        %v468 = vld [vmem:[#allocation7 + $0x228] sm:$0xff]
        %v469 = vld [vmem:[#allocation7 + $0x230] sm:$0xff]
        %v470 = vld [vmem:[#allocation7 + $0x238] sm:$0xff]
        %v471 = vld [vmem:[#allocation7 + $0x240] sm:$0xff]
        %v472 = vld [vmem:[#allocation7 + $0x248] sm:$0xff]
        %v473 = vld [vmem:[#allocation7 + $0x250] sm:$0xff]
        %v474 = vld [vmem:[#allocation7 + $0x258] sm:$0xff]
        %v475 = vld [vmem:[#allocation7 + $0x260] sm:$0xff]
        %v476 = vld [vmem:[#allocation7 + $0x268] sm:$0xff]
        %v477 = vld [vmem:[#allocation7 + $0x270] sm:$0xff]
        %v478 = vld [vmem:[#allocation7 + $0x278] sm:$0xff]
        %v479 = vld [vmem:[#allocation7 + $0x280] sm:$0xff]
        %v480 = vld [vmem:[#allocation7 + $0x288] sm:$0xff]
        %v481 = vld [vmem:[#allocation7 + $0x290] sm:$0xff]
        %v482 = vld [vmem:[#allocation7 + $0x298] sm:$0xff]
        %v483 = vld [vmem:[#allocation7 + $0x2a0] sm:$0xff]
        %v484 = vld [vmem:[#allocation7 + $0x2a8] sm:$0xff]
        %v485 = vld [vmem:[#allocation7 + $0x2b0] sm:$0xff]
        %v486 = vld [vmem:[#allocation7 + $0x2b8] sm:$0xff]
        %v487 = vld [vmem:[#allocation7 + $0x2c0] sm:$0xff]
        %v488 = vld [vmem:[#allocation7 + $0x2c8] sm:$0xff]
        %v489 = vld [vmem:[#allocation7 + $0x2d0] sm:$0xff]
        %v490 = vld [vmem:[#allocation7 + $0x2d8] sm:$0xff]
        %v491 = vld [vmem:[#allocation7 + $0x2e0] sm:$0xff]
        %v492 = vld [vmem:[#allocation7 + $0x2e8] sm:$0xff]
        %v493 = vld [vmem:[#allocation7 + $0x2f0] sm:$0xff]
        %v494 = vld [vmem:[#allocation7 + $0x2f8] sm:$0xff]
        %v495 = vld [vmem:[%s4] sm:$0x3]
        %v497 = vperm.slane %v495, 0
        %v498 = vperm.slane %v495, 1
        %501 = vmatpush.msra.mxu0 %v429
        %502 = vmatpush.msra.mxu0 %v427
        %503 = vmatpush.msra.mxu0 %v425
        %504 = vmatpush.msra.mxu0 %v423
        %505 = vmatpush.msra.mxu0 %v421
        %506 = vmatpush.msra.mxu0 %v419
        %507 = vmatpush.msra.mxu0 %v417
        %508 = vmatpush.msra.mxu0 %v415
        %509 = vmatpush.msra.mxu0 %v413
        %510 = vmatpush.msra.mxu0 %v411
        %511 = vmatpush.msra.mxu0 %v409
        %512 = vmatpush.msra.mxu0 %v407
        %513 = vmatpush.msra.mxu0 %v405
        %514 = vmatpush.msra.mxu0 %v403
        %515 = vmatpush.msra.mxu0 %v401
        %516 = vmatpush.msra.mxu0 %v399
        %517 = vmatmul.f32.gmra.mxu0 %v392
        %v518 = vpop.f32.mrf.mxu0
        %v519 = vadd.f32 %v497, %v518
        %520 = vmatmul.f32.gmra.mxu0 %v389
        %v521 = vpop.f32.mrf.mxu0
        %v522 = vadd.f32 %v497, %v521
        %523 = vdwg.mxu0
        %524 = vmatpush.msra.mxu0 %v461
        %525 = vmatpush.msra.mxu0 %v459
        %526 = vmatpush.msra.mxu0 %v457
        %527 = vmatpush.msra.mxu0 %v455
        %528 = vmatpush.msra.mxu0 %v453
        %529 = vmatpush.msra.mxu0 %v451
        %530 = vmatpush.msra.mxu0 %v449
        %531 = vmatpush.msra.mxu0 %v447
        %532 = vmatpush.msra.mxu0 %v445
        %533 = vmatpush.msra.mxu0 %v443
        %534 = vmatpush.msra.mxu0 %v441
        %535 = vmatpush.msra.mxu0 %v439
        %536 = vmatpush.msra.mxu0 %v437
        %537 = vmatpush.msra.mxu0 %v435
        %538 = vmatpush.msra.mxu0 %v433
        %539 = vmatpush.msra.mxu0 %v431
        %540 = vmatmul.f32.gmra.mxu0 %v383
        %v541 = vpop.f32.mrf.mxu0
        %v542 = vadd.f32 %v519, %v541
        %543 = vmatmul.f32.gmra.mxu0 %v384
        %v544 = vpop.f32.mrf.mxu0
        %v545 = vadd.f32 %v522, %v544
        %546 = vdwg.mxu0
        %547 = vmatpush.msra.mxu0 %v493
        %548 = vmatpush.msra.mxu0 %v491
        %549 = vmatpush.msra.mxu0 %v489
        %550 = vmatpush.msra.mxu0 %v487
        %551 = vmatpush.msra.mxu0 %v485
        %552 = vmatpush.msra.mxu0 %v483
        %553 = vmatpush.msra.mxu0 %v481
        %554 = vmatpush.msra.mxu0 %v479
        %555 = vmatpush.msra.mxu0 %v477
        %556 = vmatpush.msra.mxu0 %v475
        %557 = vmatpush.msra.mxu0 %v473
        %558 = vmatpush.msra.mxu0 %v471
        %559 = vmatpush.msra.mxu0 %v469
        %560 = vmatpush.msra.mxu0 %v467
        %561 = vmatpush.msra.mxu0 %v465
        %562 = vmatpush.msra.mxu0 %v463
        %563 = vmatmul.f32.gmra.mxu0 %v395
        %v564 = vpop.f32.mrf.mxu0
        %v565 = vadd.f32 %v542, %v564
        %566 = vmatmul.f32.gmra.mxu0 %v398
        %v567 = vpop.f32.mrf.mxu0
        %v568 = vadd.f32 %v545, %v567
        %569 = vdwg.mxu0
        %570 = vmatpush.msra.mxu0 %v430
        %571 = vmatpush.msra.mxu0 %v428
        %572 = vmatpush.msra.mxu0 %v426
        %573 = vmatpush.msra.mxu0 %v424
        %574 = vmatpush.msra.mxu0 %v422
        %575 = vmatpush.msra.mxu0 %v420
        %576 = vmatpush.msra.mxu0 %v418
        %577 = vmatpush.msra.mxu0 %v416
        %578 = vmatpush.msra.mxu0 %v414
        %579 = vmatpush.msra.mxu0 %v412
        %580 = vmatpush.msra.mxu0 %v410
        %581 = vmatpush.msra.mxu0 %v408
        %582 = vmatpush.msra.mxu0 %v406
        %583 = vmatpush.msra.mxu0 %v404
        %584 = vmatpush.msra.mxu0 %v402
        %585 = vmatpush.msra.mxu0 %v400
        %586 = vmatmul.f32.gmra.mxu0 %v392
        %v587 = vpop.f32.mrf.mxu0
        %v588 = vadd.f32 %v498, %v587
        %589 = vmatmul.f32.gmra.mxu0 %v389
        %v590 = vpop.f32.mrf.mxu0
        %v591 = vadd.f32 %v498, %v590
        %592 = vdwg.mxu0
        %593 = vmatpush.msra.mxu0 %v462
        %594 = vmatpush.msra.mxu0 %v460
        %595 = vmatpush.msra.mxu0 %v458
        %596 = vmatpush.msra.mxu0 %v456
        %597 = vmatpush.msra.mxu0 %v454
        %598 = vmatpush.msra.mxu0 %v452
        %599 = vmatpush.msra.mxu0 %v450
        %600 = vmatpush.msra.mxu0 %v448
        %601 = vmatpush.msra.mxu0 %v446
        %602 = vmatpush.msra.mxu0 %v444
        %603 = vmatpush.msra.mxu0 %v442
        %604 = vmatpush.msra.mxu0 %v440
        %605 = vmatpush.msra.mxu0 %v438
        %606 = vmatpush.msra.mxu0 %v436
        %607 = vmatpush.msra.mxu0 %v434
        %608 = vmatpush.msra.mxu0 %v432
        %609 = vmatmul.f32.gmra.mxu0 %v383
        %v610 = vpop.f32.mrf.mxu0
        %v611 = vadd.f32 %v588, %v610
        %612 = vmatmul.f32.gmra.mxu0 %v384
        %v613 = vpop.f32.mrf.mxu0
        %v614 = vadd.f32 %v591, %v613
        %615 = vdwg.mxu0
        %616 = vmatpush.msra.mxu0 %v494
        %617 = vmatpush.msra.mxu0 %v492
        %618 = vmatpush.msra.mxu0 %v490
        %619 = vmatpush.msra.mxu0 %v488
        %620 = vmatpush.msra.mxu0 %v486
        %621 = vmatpush.msra.mxu0 %v484
        %622 = vmatpush.msra.mxu0 %v482
        %623 = vmatpush.msra.mxu0 %v480
        %624 = vmatpush.msra.mxu0 %v478
        %625 = vmatpush.msra.mxu0 %v476
        %626 = vmatpush.msra.mxu0 %v474
        %627 = vmatpush.msra.mxu0 %v472
        %628 = vmatpush.msra.mxu0 %v470
        %629 = vmatpush.msra.mxu0 %v468
        %630 = vmatpush.msra.mxu0 %v466
        %631 = vmatpush.msra.mxu0 %v464
        %632 = vmatmul.f32.gmra.mxu0 %v395
        %v633 = vpop.f32.mrf.mxu0
        %v634 = vadd.f32 %v611, %v633
        %635 = vmatmul.f32.gmra.mxu0 %v398
        %v636 = vpop.f32.mrf.mxu0
        %v637 = vadd.f32 %v614, %v636
        %638 = vdwg.mxu0
        %639 = vst [vmem:[%s277] sm:$0xff] %v565
        %640 = vst [vmem:[%s277 + $0x8] sm:$0xff] %v634
        %641 = vst [vmem:[%s277 + $0x10] sm:$0xff] %v568
        %642 = vst [vmem:[%s277 + $0x18] sm:$0xff] %v637
        %s643 = sand.u32 %s141, 1
        %s644 = scalar_lea.sflag [#allocation4], %s643
        %s645 = sand.u32 %s141, 1
        %s646 = smul.addr %s645, 32
        %s647 = scalar_lea.vmem [#allocation8], %s646
        // Predicated region
        $region53: #{tpu_custom_call.1} parent=39 // pred_check
          %p648 = pneg %p151
        $region54: #{tpu_custom_call.1} parent=39 // pred_check_branch
          %650 = sbr.rel (%p648) target = $region56
        $region55: #{tpu_custom_call.1} parent=39 // pred_region
          %652 = vsyncadd %s644, 0
          %s653 = smul.addr %s23, 4
          %s654 = smul.addr %s653, 8
          %s655 = scalar_lea.hbm %s5, %s654
          %s656 = sshll.u32 %s647, 4
          %s657 = int_to_ptr.vmem [resolvable:$true] %s656
          %s658 = sshll.u32 %s655, 4
          %s659 = int_to_ptr.hbm [resolvable:$true] %s658
          %664 = dma.vmem_to_hbm [thread:$0]  %s657, 512, %s659, %s644, 256, 256, 16
        $region56: #{tpu_custom_call.1} parent=39 // pred_fallthru
          _
      $region40: #{tpu_custom_call.1} parent=5 // pred_fallthru
        _
      %p665 = scmp.le.s32.totalorder 2, %s18
      // Predicated region
      $region57: #{tpu_custom_call.1} parent=5 // pred_check
        %p666 = pneg %p665
      $region58: #{tpu_custom_call.1} parent=5 // pred_check_branch
        %668 = sbr.rel (%p666) target = $region60
      $region59: #{tpu_custom_call.1} parent=5 // pred_region
        %s669 = ssub.s32 %s18, 2
        // Predicated region
        $region61: #{tpu_custom_call.1} parent=59 // pred_check
          %p670 = pneg %p157
        $region62: #{tpu_custom_call.1} parent=59 // pred_check_branch
          %672 = sbr.rel (%p670) target = $region64
        $region63: #{tpu_custom_call.1} parent=59 // pred_region
          %s673 = sand.u32 %s142, 1
          %s674 = scalar_lea.sflag [#allocation4], %s673
          %s675 = sand.u32 %s142, 1
          %s676 = smul.addr %s675, 32
          %s677 = scalar_lea.vmem [#allocation8], %s676
          %679 = dma.done %s674, 512
        $region64: #{tpu_custom_call.1} parent=59 // pred_fallthru
          _
      $region60: #{tpu_custom_call.1} parent=5 // pred_fallthru
        _
    $region6: #{tpu_custom_call.1} parent=1 // loop_footer
      %s22 = sadd.s32 1, %s18
    $region7: #{tpu_custom_call.1} parent=1 // loop_footer_branch
      %17 = sbr.rel target = $region3
    $region8: #{tpu_custom_call.1} parent=1 // loop_exit
      _
    %680 = vsyncpa [#allocation3], 1
    %s681 = scalar_lea.sflag [#allocation3], 1
    %682 = vsyncpa %s681, 1
    %683 = vsyncpa [#allocation6], 1
    %684 = vsyncpa [#allocation4], 1
    %s685 = scalar_lea.sflag [#allocation4], 1
    %686 = vsyncpa %s685, 1

</llo_original>
